<compile_context>
chip_gen: v7x
topology: tpu7x:2x2x1
jax: 0.10.0
libtpu: 0.0.40
codegen_flags: <defaults>
</compile_context>

<pallas_src>
from functools import partial

import jax
import jax.numpy as jnp
from jax import lax
from jax.experimental import pallas as pl
from jax.experimental.pallas import tpu as pltpu

# ---- config fields the module reads (BERT-ish, scaled down) -----------------------
L = 8                    # label_num = config.num_labels - 3  (num_labels = 11)
H = 32                   # config.hidden_size
NUM_HEADS = 4            # config.num_attention_heads
HEAD_DIM = H // NUM_HEADS
INTER = 64               # config.intermediate_size
T = 4                    # padded label-name token length
VOCAB = 50               # word-embedding vocab
PAD_ID = 0               # tokenizer.pad_token_id
EDGE_LEN = 15            # edge_mat last dim
NUM_LAYERS = 1           # cf['layer'] = 1
LN_EPS = 1e-5            # nn.LayerNorm default
SCALING = HEAD_DIM ** -0.5

# ---- packed constant slab layout (width 128, f32) ----------------------------------
SLAB_W = 128
ROWS_PER_LAYER = 2 * H + 8           # [wqkv|wo] rows + [w1|w2^T] rows + 8 small rows
GLOBAL_ROWS = max(L, NUM_HEADS * L)  # pooled_plus_id + block-diag attention bias
TOTAL_ROWS = ((NUM_LAYERS * ROWS_PER_LAYER + GLOBAL_ROWS + 7) // 8) * 8

assert 4 * H <= SLAB_W and 2 * INTER <= SLAB_W and H + NUM_HEADS * L <= SLAB_W
assert NUM_HEADS * HEAD_DIM == H


# ------------------------------ fused forward kernel --------------------------------
def graph_encoder_kernel(x_ref, slab_ref, out_ref, *,
                         num_layers, num_heads, head_dim, inter, eps, rows_per_layer):
    f32 = jnp.float32
    hidden = num_heads * head_dim
    n = x_ref.shape[1]                                   # L
    gb = num_layers * rows_per_layer                     # global-constant row base

    # label_emb + (masked-mean name embedding + id embedding), folded at init
    x = x_ref[0] + slab_ref[gb:gb + n, 0:hidden]                              # [L, H]
    # block-diagonal attention bias (extra_attn on diag blocks, -1e9 off-block),
    # hoisted outside the layer loop
    attn_bias = slab_ref[gb:gb + num_heads * n,
                         hidden:hidden + num_heads * n]                       # [nh*L, nh*L]

    for l in range(num_layers):                                               # static unroll
        base = l * rows_per_layer
        wqkv = slab_ref[base:base + hidden, 0:3 * hidden]                     # [H, 3H]
        wo = slab_ref[base:base + hidden, 3 * hidden:4 * hidden]              # [H, H]
        w1 = slab_ref[base + hidden:base + 2 * hidden, 0:inter]               # [H, INTER]
        w2t = slab_ref[base + hidden:base + 2 * hidden, inter:2 * inter]      # [H, INTER] = w2^T
        sm = base + 2 * hidden
        bqkv = slab_ref[sm + 0:sm + 1, 0:3 * hidden]
        bo = slab_ref[sm + 1:sm + 2, 0:hidden]
        ln1_g = slab_ref[sm + 2:sm + 3, 0:hidden]
        ln1_b = slab_ref[sm + 3:sm + 4, 0:hidden]
        bfc1 = slab_ref[sm + 4:sm + 5, 0:inter]
        bfc2 = slab_ref[sm + 5:sm + 6, 0:hidden]
        ln2_g = slab_ref[sm + 6:sm + 7, 0:hidden]
        ln2_b = slab_ref[sm + 7:sm + 8, 0:hidden]

        # fused QKV projection (q-scaling folded into wqkv/bqkv at init)
        qkv = jnp.dot(x, wqkv, preferred_element_type=f32) + bqkv             # [L, 3H]

        # head-stacked layout [nh*L, hd] via static slices + sublane concat
        q = jnp.concatenate(
            [qkv[:, h * head_dim:(h + 1) * head_dim] for h in range(num_heads)], axis=0)
        k = jnp.concatenate(
            [qkv[:, hidden + h * head_dim:hidden + (h + 1) * head_dim]
             for h in range(num_heads)], axis=0)
        v = jnp.concatenate(
            [qkv[:, 2 * hidden + h * head_dim:2 * hidden + (h + 1) * head_dim]
             for h in range(num_heads)], axis=0)                              # [nh*L, hd]

        # ONE block-diagonal score matmul instead of per-head einsums
        s = lax.dot_general(q, k, (((1,), (1,)), ((), ())),
                            preferred_element_type=f32) + attn_bias           # [nh*L, nh*L]
        s = s - jnp.max(s, axis=-1, keepdims=True)
        p = jnp.exp(s)                       # off-block entries underflow to exactly 0
        p = p / jnp.sum(p, axis=-1, keepdims=True)          # exact softmax (PyTorch parity)
        ctx = jnp.dot(p, v, preferred_element_type=f32)                       # [nh*L, hd]
        # back to [L, H] (lane concat of per-head row blocks)
        ctx = jnp.concatenate(
            [ctx[h * n:(h + 1) * n, :] for h in range(num_heads)], axis=1)    # [L, H]
        attn = jnp.dot(ctx, wo, preferred_element_type=f32) + bo              # [L, H]

        # residual + LayerNorm (dropout == identity in eval mode)
        y = x + attn
        mu = jnp.mean(y, axis=-1, keepdims=True)
        var = jnp.mean((y - mu) ** 2, axis=-1, keepdims=True)
        y = (y - mu) * lax.rsqrt(var + eps) * ln1_g + ln1_b

        # feed-forward
        h1 = jnp.dot(y, w1, preferred_element_type=f32) + bfc1
        # TODO(synk): ACT2FN['gelu'] is exact erf-GELU; tanh approximation used here
        # (max abs diff ~1e-3) since erf lowering is not guaranteed in Mosaic.
        h1 = 0.5 * h1 * (1.0 + jnp.tanh(0.7978845608028654 *
                                        (h1 + 0.044715 * h1 * h1 * h1)))
        h2 = lax.dot_general(h1, w2t, (((1,), (1,)), ((), ())),
                             preferred_element_type=f32) + bfc2

        z = y + h2
        mu2 = jnp.mean(z, axis=-1, keepdims=True)
        var2 = jnp.mean((z - mu2) ** 2, axis=-1, keepdims=True)
        x = (z - mu2) * lax.rsqrt(var2 + eps) * ln2_g + ln2_b

    out_ref[0] = x


def graph_encoder_forward(label_emb, const_slab):
    """GraphEncoder.forward as one pallas_call.

    label_emb: [L, H] (single, as in the module) or [B, L, H] (batched instances);
    the batch axis is a 'parallel' grid axis (sharded across v7x's 2 TensorCores).
    """
    single = label_emb.ndim == 2
    x = label_emb[None] if single else label_emb
    b = x.shape[0]
    kernel = partial(graph_encoder_kernel, num_layers=NUM_LAYERS, num_heads=NUM_HEADS,
                     head_dim=HEAD_DIM, inter=INTER, eps=LN_EPS,
                     rows_per_layer=ROWS_PER_LAYER)
    out = pl.pallas_call(
        kernel,
        out_shape=jax.ShapeDtypeStruct((b, L, H), jnp.float32),
        grid=(b,),
        in_specs=[pl.BlockSpec((1, L, H), lambda i: (i, 0, 0)),
                  pl.BlockSpec((TOTAL_ROWS, SLAB_W), lambda i: (0, 0))],   # DMA'd once
        out_specs=pl.BlockSpec((1, L, H), lambda i: (i, 0, 0)),
        compiler_params=pltpu.CompilerParams(dimension_semantics=("parallel",)),
    )(x, const_slab)
    return out[0] if single else out


# --------------------------- parameter / buffer construction -----------------------
def build_params(key, emb_table):
    """Synthesize module constants/weights and pack them into one lane-dense slab."""
    scale = 0.02
    (k_layers, k_name, k_len, k_idtab, k_dist, k_edge, k_dt, k_et) = jax.random.split(key, 8)

    def lin(k, din, dout):
        kw, kb = jax.random.split(k)
        w = scale * jax.random.normal(kw, (din, dout), jnp.float32)   # stored [in, out]
        b = scale * jax.random.normal(kb, (dout,), jnp.float32)
        return w, b

    # label_name token ids (padded with pad_token_id = 0), >= 2 real tokens per row
    real = jax.random.randint(k_name, (L, T), 1, VOCAB)
    n_real = jax.random.randint(k_len, (L, 1), 2, T + 1)
    label_name = jnp.where(jnp.arange(T)[None, :] < n_real, real, PAD_ID).astype(jnp.int32)

    # masked-mean pooled name embeddings + id_embedding, folded into one constant
    mask = (label_name != PAD_ID).astype(jnp.float32)
    name_emb = jnp.take(emb_table, label_name, axis=0)                # [L, T, H]
    pooled = (name_emb * mask[..., None]).sum(1) / mask.sum(1, keepdims=True)
    id_table = scale * jax.random.normal(k_idtab, (L, H), jnp.float32)
    id_table = id_table.at[0].set(0.0)                                # padding_idx = 0
    pooled_plus_id = pooled + id_table                                # [L, H]

    # graphormer structural buffers -> constant extra_attn
    eye = jnp.eye(L, dtype=bool)
    dist_full = jnp.where(eye, 0, jax.random.randint(k_dist, (L, L), 2, 16))
    distance_mat = dist_full.reshape(1, L * L).astype(jnp.int32)
    edge_full = jnp.where(eye[:, :, None], 0,
                          jax.random.randint(k_edge, (L, L, EDGE_LEN), 0, L))
    edge_mat = edge_full.reshape(L * L, EDGE_LEN).astype(jnp.int32)
    distance_table = (scale * jax.random.normal(k_dt, (20, 1), jnp.float32)).at[0].set(0.0)
    edge_table = (scale * jax.random.normal(k_et, (L, 1), jnp.float32)).at[0].set(0.0)
    dist_emb = jnp.take(distance_table, distance_mat, axis=0)         # [1, L*L, 1]
    edge_emb = jnp.take(edge_table, edge_mat, axis=0)                 # [L*L, 15, 1]
    extra = dist_emb + edge_emb.sum(axis=1) / (
        distance_mat.reshape(-1, 1).astype(jnp.float32) + 1e-8)
    extra_attn = extra.reshape(L, L)

    # block-diagonal attention bias: extra_attn per head-block, -1e9 off-block
    attn_bias = jnp.full((NUM_HEADS * L, NUM_HEADS * L), -1e9, jnp.float32)
    for h in range(NUM_HEADS):
        attn_bias = attn_bias.at[h * L:(h + 1) * L, h * L:(h + 1) * L].set(extra_attn)

    def row(v):
        v = jnp.asarray(v, jnp.float32).reshape(1, -1)
        return jnp.pad(v, ((0, 0), (0, SLAB_W - v.shape[1])))

    slab = jnp.zeros((TOTAL_ROWS, SLAB_W), jnp.float32)
    layers_raw = []
    for l, lk in enumerate(jax.random.split(k_layers, NUM_LAYERS)):
        ks = jax.random.split(lk, 6)
        wq, bq = lin(ks[0], H, H)
        wk, bk = lin(ks[1], H, H)
        wv, bv = lin(ks[2], H, H)
        wo, bo = lin(ks[3], H, H)
        w1, bfc1 = lin(ks[4], H, INTER)
        w2, bfc2 = lin(ks[5], INTER, H)
        ln1_g, ln1_b = jnp.ones((H,), jnp.float32), jnp.zeros((H,), jnp.float32)
        ln2_g, ln2_b = jnp.ones((H,), jnp.float32), jnp.zeros((H,), jnp.float32)
        # fuse QKV; fold 1/sqrt(head_dim) scaling into the q block
        wqkv = jnp.concatenate([wq * SCALING, wk, wv], axis=1)        # [H, 3H]
        bqkv = jnp.concatenate([bq * SCALING, bk, bv], axis=0)        # [3H]
        small = jnp.concatenate([row(bqkv), row(bo), row(ln1_g), row(ln1_b),
                                 row(bfc1), row(bfc2), row(ln2_g), row(ln2_b)], axis=0)
        base = l * ROWS_PER_LAYER
        slab = slab.at[base:base + H, 0:3 * H].set(wqkv)
        slab = slab.at[base:base + H, 3 * H:4 * H].set(wo)
        slab = slab.at[base + H:base + 2 * H, 0:INTER].set(w1)
        slab = slab.at[base + H:base + 2 * H, INTER:2 * INTER].set(w2.T)
        slab = slab.at[base + 2 * H:base + 2 * H + 8, :].set(small)
        layers_raw.append(dict(wq=wq, bq=bq, wk=wk, bk=bk, wv=wv, bv=bv, wo=wo, bo=bo,
                               w1=w1, bfc1=bfc1, w2=w2, bfc2=bfc2,
                               ln1_g=ln1_g, ln1_b=ln1_b, ln2_g=ln2_g, ln2_b=ln2_b))

    gb = NUM_LAYERS * ROWS_PER_LAYER
    slab = slab.at[gb:gb + L, 0:H].set(pooled_plus_id)
    slab = slab.at[gb:gb + NUM_HEADS * L, H:H + NUM_HEADS * L].set(attn_bias)

    raw = dict(label_name=label_name, id_table=id_table, extra_attn=extra_attn,
               layers=layers_raw)
    return slab, raw


# --------------------------- pure-JAX reference (validation) -----------------------
def _gelu_tanh(x):
    return 0.5 * x * (1.0 + jnp.tanh(0.7978845608028654 * (x + 0.044715 * x * x * x)))


def _layer_norm(x, g, b, eps=LN_EPS):
    mu = jnp.mean(x, axis=-1, keepdims=True)
    var = jnp.mean((x - mu) ** 2, axis=-1, keepdims=True)
    return (x - mu) * lax.rsqrt(var + eps) * g + b


def reference_forward(label_emb, emb_table, raw):
    """Module-faithful forward (eval mode, unfused weights) for validating the kernel."""
    mask = (raw['label_name'] != PAD_ID).astype(jnp.float32)
    name_emb = jnp.take(emb_table, raw['label_name'], axis=0)         # [L, T, H]
    x = label_emb + (name_emb * mask[..., None]).sum(1) / mask.sum(1, keepdims=True)
    x = x + raw['id_table']
    extra = raw['extra_attn']
    for p in raw['layers']:
        q = (x @ p['wq'] + p['bq']) * SCALING
        k = x @ p['wk'] + p['bk']
        v = x @ p['wv'] + p['bv']
        qh = q.reshape(L, NUM_HEADS, HEAD_DIM).transpose(1, 0, 2)
        kh = k.reshape(L, NUM_HEADS, HEAD_DIM).transpose(1, 0, 2)
        vh = v.reshape(L, NUM_HEADS, HEAD_DIM).transpose(1, 0, 2)
        s = jnp.einsum('hqd,hkd->hqk', qh, kh) + extra[None]
        a = jax.nn.softmax(s, axis=-1)
        ctx = jnp.einsum('hqk,hkd->hqd', a, vh).transpose(1, 0, 2).reshape(L, H)
        y = _layer_norm(x + (ctx @ p['wo'] + p['bo']), p['ln1_g'], p['ln1_b'])
        hmid = _gelu_tanh(y @ p['w1'] + p['bfc1'])
        x = _layer_norm(y + (hmid @ p['w2'] + p['bfc2']), p['ln2_g'], p['ln2_b'])
    return x


if __name__ == "__main__":
    key = jax.random.PRNGKey(0)
    k_emb, k_tab, k_par = jax.random.split(key, 3)
    label_emb = jax.random.normal(k_emb, (L, H), jnp.float32)             # module input
    emb_table = 0.02 * jax.random.normal(k_tab, (VOCAB, H), jnp.float32)  # `embeddings` weight
    const_slab, raw = build_params(k_par, emb_table)

    out = graph_encoder_forward(label_emb, const_slab)
    out = jax.block_until_ready(out)
    assert out.shape == (L, H) and out.dtype == jnp.float32
    assert bool(jnp.all(jnp.isfinite(out)))

    with jax.default_matmul_precision("highest"):
        ref = reference_forward(label_emb, emb_table, raw)
    err = float(jnp.max(jnp.abs(out - ref)))
    assert err < 2e-2, f"kernel vs reference max abs diff {err}"
    print("KERNEL_OK")
</pallas_src>

<mosaic_0001>
module attributes {stable_mosaic.version = 11 : i64} {
  func.func @graph_encoder_kernel(%arg0: i32, %arg1: memref<1x8x32xf32, #tpu.memory_space<vmem>>, %arg2: memref<104x128xf32, #tpu.memory_space<vmem>>, %arg3: memref<1x8x32xf32, #tpu.memory_space<vmem>>) attributes {dimension_semantics = [#tpu.dimension_semantics<parallel>], iteration_bounds = array<i64: 1>, scalar_prefetch = 0 : i64, scratch_operands = 0 : i64, tpu.core_type = #tpu.core_type<tc>, window_params = [{transform_indices = @transform_0, window_bounds = array<i64: 1, 8, 32>}, {pipeline_mode = #tpu.pipeline_mode<synchronous>, transform_indices = @transform_1, window_bounds = array<i64: 104, 128>}, {transform_indices = @transform_2, window_bounds = array<i64: 1, 8, 32>}]} {
    %c0 = arith.constant 0 : index
    %c0_0 = arith.constant 0 : index
    %c0_1 = arith.constant 0 : index
    %0 = vector.load %arg1[%c0, %c0_0, %c0_1] : memref<1x8x32xf32, #tpu.memory_space<vmem>>, vector<1x8x32xf32>
    %1 = vector.shape_cast %0 : vector<1x8x32xf32> to vector<8x32xf32>
    %c72 = arith.constant 72 : index
    %c0_2 = arith.constant 0 : index
    %2 = vector.load %arg2[%c72, %c0_2] : memref<104x128xf32, #tpu.memory_space<vmem>>, vector<8x32xf32>
    %3 = arith.addf %1, %2 : vector<8x32xf32>
    %c72_3 = arith.constant 72 : index
    %c32 = arith.constant 32 : index
    %4 = vector.load %arg2[%c72_3, %c32] : memref<104x128xf32, #tpu.memory_space<vmem>>, vector<32x32xf32>
    %c0_4 = arith.constant 0 : index
    %c0_5 = arith.constant 0 : index
    %5 = vector.load %arg2[%c0_4, %c0_5] : memref<104x128xf32, #tpu.memory_space<vmem>>, vector<32x96xf32>
    %c0_6 = arith.constant 0 : index
    %c96 = arith.constant 96 : index
    %6 = vector.load %arg2[%c0_6, %c96] : memref<104x128xf32, #tpu.memory_space<vmem>>, vector<32x32xf32>
    %c32_7 = arith.constant 32 : index
    %c0_8 = arith.constant 0 : index
    %7 = vector.load %arg2[%c32_7, %c0_8] : memref<104x128xf32, #tpu.memory_space<vmem>>, vector<32x64xf32>
    %c32_9 = arith.constant 32 : index
    %c64 = arith.constant 64 : index
    %8 = vector.load %arg2[%c32_9, %c64] : memref<104x128xf32, #tpu.memory_space<vmem>>, vector<32x64xf32>
    %c64_10 = arith.constant 64 : index
    %c0_11 = arith.constant 0 : index
    %9 = vector.load %arg2[%c64_10, %c0_11] : memref<104x128xf32, #tpu.memory_space<vmem>>, vector<1x96xf32>
    %c65 = arith.constant 65 : index
    %c0_12 = arith.constant 0 : index
    %10 = vector.load %arg2[%c65, %c0_12] : memref<104x128xf32, #tpu.memory_space<vmem>>, vector<1x32xf32>
    %c66 = arith.constant 66 : index
    %c0_13 = arith.constant 0 : index
    %11 = vector.load %arg2[%c66, %c0_13] : memref<104x128xf32, #tpu.memory_space<vmem>>, vector<1x32xf32>
    %c67 = arith.constant 67 : index
    %c0_14 = arith.constant 0 : index
    %12 = vector.load %arg2[%c67, %c0_14] : memref<104x128xf32, #tpu.memory_space<vmem>>, vector<1x32xf32>
    %c68 = arith.constant 68 : index
    %c0_15 = arith.constant 0 : index
    %13 = vector.load %arg2[%c68, %c0_15] : memref<104x128xf32, #tpu.memory_space<vmem>>, vector<1x64xf32>
    %c69 = arith.constant 69 : index
    %c0_16 = arith.constant 0 : index
    %14 = vector.load %arg2[%c69, %c0_16] : memref<104x128xf32, #tpu.memory_space<vmem>>, vector<1x32xf32>
    %c70 = arith.constant 70 : index
    %c0_17 = arith.constant 0 : index
    %15 = vector.load %arg2[%c70, %c0_17] : memref<104x128xf32, #tpu.memory_space<vmem>>, vector<1x32xf32>
    %c71 = arith.constant 71 : index
    %c0_18 = arith.constant 0 : index
    %16 = vector.load %arg2[%c71, %c0_18] : memref<104x128xf32, #tpu.memory_space<vmem>>, vector<1x32xf32>
    %cst = arith.constant dense<0.000000e+00> : vector<8x96xf32>
    %17 = tpu.matmul %3, %5, %cst {dimension_numbers = #tpu.dot_dimension_numbers<[1], [0], [0], [1], [0, 0, 1, 1], [], []>} : vector<8x32xf32>, vector<32x96xf32>, vector<8x96xf32> -> vector<8x96xf32>
    %18 = vector.broadcast %9 : vector<1x96xf32> to vector<8x96xf32>
    %19 = arith.addf %17, %18 : vector<8x96xf32>
    %20 = vector.extract_strided_slice %19 {offsets = [0, 0], sizes = [8, 8], strides = [1, 1]} : vector<8x96xf32> to vector<8x8xf32>
    %21 = vector.extract_strided_slice %19 {offsets = [0, 8], sizes = [8, 8], strides = [1, 1]} : vector<8x96xf32> to vector<8x8xf32>
    %22 = vector.extract_strided_slice %19 {offsets = [0, 16], sizes = [8, 8], strides = [1, 1]} : vector<8x96xf32> to vector<8x8xf32>
    %23 = vector.extract_strided_slice %19 {offsets = [0, 24], sizes = [8, 8], strides = [1, 1]} : vector<8x96xf32> to vector<8x8xf32>
    %24 = tpu.concatenate %20, %21, %22, %23 in 0 : vector<8x8xf32>, vector<8x8xf32>, vector<8x8xf32>, vector<8x8xf32> -> vector<32x8xf32>
    %25 = vector.extract_strided_slice %19 {offsets = [0, 32], sizes = [8, 8], strides = [1, 1]} : vector<8x96xf32> to vector<8x8xf32>
    %26 = vector.extract_strided_slice %19 {offsets = [0, 40], sizes = [8, 8], strides = [1, 1]} : vector<8x96xf32> to vector<8x8xf32>
    %27 = vector.extract_strided_slice %19 {offsets = [0, 48], sizes = [8, 8], strides = [1, 1]} : vector<8x96xf32> to vector<8x8xf32>
    %28 = vector.extract_strided_slice %19 {offsets = [0, 56], sizes = [8, 8], strides = [1, 1]} : vector<8x96xf32> to vector<8x8xf32>
    %29 = tpu.concatenate %25, %26, %27, %28 in 0 : vector<8x8xf32>, vector<8x8xf32>, vector<8x8xf32>, vector<8x8xf32> -> vector<32x8xf32>
    %30 = vector.extract_strided_slice %19 {offsets = [0, 64], sizes = [8, 8], strides = [1, 1]} : vector<8x96xf32> to vector<8x8xf32>
    %31 = vector.extract_strided_slice %19 {offsets = [0, 72], sizes = [8, 8], strides = [1, 1]} : vector<8x96xf32> to vector<8x8xf32>
    %32 = vector.extract_strided_slice %19 {offsets = [0, 80], sizes = [8, 8], strides = [1, 1]} : vector<8x96xf32> to vector<8x8xf32>
    %33 = vector.extract_strided_slice %19 {offsets = [0, 88], sizes = [8, 8], strides = [1, 1]} : vector<8x96xf32> to vector<8x8xf32>
    %34 = tpu.concatenate %30, %31, %32, %33 in 0 : vector<8x8xf32>, vector<8x8xf32>, vector<8x8xf32>, vector<8x8xf32> -> vector<32x8xf32>
    %cst_19 = arith.constant dense<0.000000e+00> : vector<32x32xf32>
    %35 = tpu.matmul %24, %29, %cst_19 {dimension_numbers = #tpu.dot_dimension_numbers<[1], [1], [0], [0], [0, 0, 1, 0], [], []>} : vector<32x8xf32>, vector<32x8xf32>, vector<32x32xf32> -> vector<32x32xf32>
    %36 = arith.addf %35, %4 : vector<32x32xf32>
    %cst_20 = arith.constant dense<0xFF800000> : vector<32xf32>
    %37 = vector.multi_reduction <maximumf>, %36, %cst_20 [1] : vector<32x32xf32> to vector<32xf32>
    %38 = vector.shape_cast %37 : vector<32xf32> to vector<32x1xf32>
    %39 = vector.broadcast %38 : vector<32x1xf32> to vector<32x32xf32>
    %40 = arith.subf %36, %39 : vector<32x32xf32>
    %41 = math.exp %40 : vector<32x32xf32>
    %cst_21 = arith.constant dense<0.000000e+00> : vector<32xf32>
    %42 = vector.multi_reduction <add>, %41, %cst_21 [1] : vector<32x32xf32> to vector<32xf32>
    %43 = vector.shape_cast %42 : vector<32xf32> to vector<32x1xf32>
    %44 = vector.broadcast %43 : vector<32x1xf32> to vector<32x32xf32>
    %45 = arith.divf %41, %44 : vector<32x32xf32>
    %cst_22 = arith.constant dense<0.000000e+00> : vector<32x8xf32>
    %46 = tpu.matmul %45, %34, %cst_22 {dimension_numbers = #tpu.dot_dimension_numbers<[1], [0], [0], [1], [0, 0, 1, 1], [], []>} : vector<32x32xf32>, vector<32x8xf32>, vector<32x8xf32> -> vector<32x8xf32>
    %47 = vector.extract_strided_slice %46 {offsets = [0, 0], sizes = [8, 8], strides = [1, 1]} : vector<32x8xf32> to vector<8x8xf32>
    %48 = vector.extract_strided_slice %46 {offsets = [8, 0], sizes = [8, 8], strides = [1, 1]} : vector<32x8xf32> to vector<8x8xf32>
    %49 = vector.extract_strided_slice %46 {offsets = [16, 0], sizes = [8, 8], strides = [1, 1]} : vector<32x8xf32> to vector<8x8xf32>
    %50 = vector.extract_strided_slice %46 {offsets = [24, 0], sizes = [8, 8], strides = [1, 1]} : vector<32x8xf32> to vector<8x8xf32>
    %51 = tpu.concatenate %47, %48, %49, %50 in 1 : vector<8x8xf32>, vector<8x8xf32>, vector<8x8xf32>, vector<8x8xf32> -> vector<8x32xf32>
    %cst_23 = arith.constant dense<0.000000e+00> : vector<8x32xf32>
    %52 = tpu.matmul %51, %6, %cst_23 {dimension_numbers = #tpu.dot_dimension_numbers<[1], [0], [0], [1], [0, 0, 1, 1], [], []>} : vector<8x32xf32>, vector<32x32xf32>, vector<8x32xf32> -> vector<8x32xf32>
    %53 = vector.broadcast %10 : vector<1x32xf32> to vector<8x32xf32>
    %54 = arith.addf %52, %53 : vector<8x32xf32>
    %55 = arith.addf %3, %54 : vector<8x32xf32>
    %cst_24 = arith.constant dense<0.000000e+00> : vector<8xf32>
    %56 = vector.multi_reduction <add>, %55, %cst_24 [1] : vector<8x32xf32> to vector<8xf32>
    %57 = vector.shape_cast %56 : vector<8xf32> to vector<8x1xf32>
    %cst_25 = arith.constant 3.200000e+01 : f32
    %58 = vector.broadcast %cst_25 : f32 to vector<8x1xf32>
    %59 = arith.divf %57, %58 : vector<8x1xf32>
    %60 = vector.broadcast %59 : vector<8x1xf32> to vector<8x32xf32>
    %61 = arith.subf %55, %60 : vector<8x32xf32>
    %62 = arith.mulf %61, %61 : vector<8x32xf32>
    %cst_26 = arith.constant dense<0.000000e+00> : vector<8xf32>
    %63 = vector.multi_reduction <add>, %62, %cst_26 [1] : vector<8x32xf32> to vector<8xf32>
    %64 = vector.shape_cast %63 : vector<8xf32> to vector<8x1xf32>
    %cst_27 = arith.constant 3.200000e+01 : f32
    %65 = vector.broadcast %cst_27 : f32 to vector<8x1xf32>
    %66 = arith.divf %64, %65 : vector<8x1xf32>
    %67 = vector.broadcast %59 : vector<8x1xf32> to vector<8x32xf32>
    %68 = arith.subf %55, %67 : vector<8x32xf32>
    %cst_28 = arith.constant 9.99999974E-6 : f32
    %69 = vector.broadcast %cst_28 : f32 to vector<8x1xf32>
    %70 = arith.addf %66, %69 : vector<8x1xf32>
    %71 = math.rsqrt %70 : vector<8x1xf32>
    %72 = vector.broadcast %71 : vector<8x1xf32> to vector<8x32xf32>
    %73 = arith.mulf %68, %72 : vector<8x32xf32>
    %74 = vector.broadcast %11 : vector<1x32xf32> to vector<8x32xf32>
    %75 = arith.mulf %73, %74 : vector<8x32xf32>
    %76 = vector.broadcast %12 : vector<1x32xf32> to vector<8x32xf32>
    %77 = arith.addf %75, %76 : vector<8x32xf32>
    %cst_29 = arith.constant dense<0.000000e+00> : vector<8x64xf32>
    %78 = tpu.matmul %77, %7, %cst_29 {dimension_numbers = #tpu.dot_dimension_numbers<[1], [0], [0], [1], [0, 0, 1, 1], [], []>} : vector<8x32xf32>, vector<32x64xf32>, vector<8x64xf32> -> vector<8x64xf32>
    %79 = vector.broadcast %13 : vector<1x64xf32> to vector<8x64xf32>
    %80 = arith.addf %78, %79 : vector<8x64xf32>
    %cst_30 = arith.constant 5.000000e-01 : f32
    %81 = vector.broadcast %cst_30 : f32 to vector<8x64xf32>
    %82 = arith.mulf %81, %80 : vector<8x64xf32>
    %cst_31 = arith.constant 4.471500e-02 : f32
    %83 = vector.broadcast %cst_31 : f32 to vector<8x64xf32>
    %84 = arith.mulf %83, %80 : vector<8x64xf32>
    %85 = arith.mulf %84, %80 : vector<8x64xf32>
    %86 = arith.mulf %85, %80 : vector<8x64xf32>
    %87 = arith.addf %80, %86 : vector<8x64xf32>
    %cst_32 = arith.constant 0.797884583 : f32
    %88 = vector.broadcast %cst_32 : f32 to vector<8x64xf32>
    %89 = arith.mulf %88, %87 : vector<8x64xf32>
    %90 = math.tanh %89 : vector<8x64xf32>
    %cst_33 = arith.constant 1.000000e+00 : f32
    %91 = vector.broadcast %cst_33 : f32 to vector<8x64xf32>
    %92 = arith.addf %91, %90 : vector<8x64xf32>
    %93 = arith.mulf %82, %92 : vector<8x64xf32>
    %cst_34 = arith.constant dense<0.000000e+00> : vector<8x32xf32>
    %94 = tpu.matmul %93, %8, %cst_34 {dimension_numbers = #tpu.dot_dimension_numbers<[1], [1], [0], [0], [0, 0, 1, 0], [], []>} : vector<8x64xf32>, vector<32x64xf32>, vector<8x32xf32> -> vector<8x32xf32>
    %95 = vector.broadcast %14 : vector<1x32xf32> to vector<8x32xf32>
    %96 = arith.addf %94, %95 : vector<8x32xf32>
    %97 = arith.addf %77, %96 : vector<8x32xf32>
    %cst_35 = arith.constant dense<0.000000e+00> : vector<8xf32>
    %98 = vector.multi_reduction <add>, %97, %cst_35 [1] : vector<8x32xf32> to vector<8xf32>
    %99 = vector.shape_cast %98 : vector<8xf32> to vector<8x1xf32>
    %cst_36 = arith.constant 3.200000e+01 : f32
    %100 = vector.broadcast %cst_36 : f32 to vector<8x1xf32>
    %101 = arith.divf %99, %100 : vector<8x1xf32>
    %102 = vector.broadcast %101 : vector<8x1xf32> to vector<8x32xf32>
    %103 = arith.subf %97, %102 : vector<8x32xf32>
    %104 = arith.mulf %103, %103 : vector<8x32xf32>
    %cst_37 = arith.constant dense<0.000000e+00> : vector<8xf32>
    %105 = vector.multi_reduction <add>, %104, %cst_37 [1] : vector<8x32xf32> to vector<8xf32>
    %106 = vector.shape_cast %105 : vector<8xf32> to vector<8x1xf32>
    %cst_38 = arith.constant 3.200000e+01 : f32
    %107 = vector.broadcast %cst_38 : f32 to vector<8x1xf32>
    %108 = arith.divf %106, %107 : vector<8x1xf32>
    %109 = vector.broadcast %101 : vector<8x1xf32> to vector<8x32xf32>
    %110 = arith.subf %97, %109 : vector<8x32xf32>
    %cst_39 = arith.constant 9.99999974E-6 : f32
    %111 = vector.broadcast %cst_39 : f32 to vector<8x1xf32>
    %112 = arith.addf %108, %111 : vector<8x1xf32>
    %113 = math.rsqrt %112 : vector<8x1xf32>
    %114 = vector.broadcast %113 : vector<8x1xf32> to vector<8x32xf32>
    %115 = arith.mulf %110, %114 : vector<8x32xf32>
    %116 = vector.broadcast %15 : vector<1x32xf32> to vector<8x32xf32>
    %117 = arith.mulf %115, %116 : vector<8x32xf32>
    %118 = vector.broadcast %16 : vector<1x32xf32> to vector<8x32xf32>
    %119 = arith.addf %117, %118 : vector<8x32xf32>
    %c0_40 = arith.constant 0 : index
    %c0_41 = arith.constant 0 : index
    %c0_42 = arith.constant 0 : index
    %120 = vector.load %arg3[%c0_40, %c0_41, %c0_42] : memref<1x8x32xf32, #tpu.memory_space<vmem>>, vector<1x8x32xf32>
    %121 = vector.shape_cast %120 : vector<1x8x32xf32> to vector<8x32xf32>
    %122 = vector.shape_cast %119 : vector<8x32xf32> to vector<1x8x32xf32>
    tpu.vector_store %arg3[%c0_40, %c0_41, %c0_42], %122 {strides = array<i32>} : memref<1x8x32xf32, #tpu.memory_space<vmem>>, vector<1x8x32xf32>,
    return
  }
  func.func @transform_0(%arg0: i32) -> (i32, i32, i32) {
    %c0_i32 = arith.constant 0 : i32
    %c0_i32_0 = arith.constant 0 : i32
    %c0_i32_1 = arith.constant 0 : i32
    return %arg0, %c0_i32, %c0_i32_0 : i32, i32, i32
  }
  func.func @transform_1(%arg0: i32) -> (i32, i32) {
    %c0_i32 = arith.constant 0 : i32
    %c0_i32_0 = arith.constant 0 : i32
    %c0_i32_1 = arith.constant 0 : i32
    return %c0_i32, %c0_i32_0 : i32, i32
  }
  func.func @transform_2(%arg0: i32) -> (i32, i32, i32) {
    %c0_i32 = arith.constant 0 : i32
    %c0_i32_0 = arith.constant 0 : i32
    %c0_i32_1 = arith.constant 0 : i32
    return %arg0, %c0_i32, %c0_i32_0 : i32, i32, i32
  }
}

</mosaic_0001>

<llo_original>
// kernel: tpu_custom_call.1
$region0: #{tpu_custom_call.1}
  #allocation0 [shape = 'u32[]', space=smem, size = 0x4, offset = 0x4, fixed_abs, tag = 'smem constant byte address 0x4 - core index']
  #allocation1 [shape = 'u32[144,128]{1,0:T(1,128)}', space=vmem, size = 0x12000, scoped, tag = 'internal scratch']
  %s0 = inlined_call_operand.hbm [shape: f32[1,8,32], index: 0, kind: input, shape index: {}]
  %s1 = inlined_call_operand.hbm [shape: f32[104,128], index: 1, kind: input, shape index: {}]
  %s2 = inlined_call_operand.hbm [shape: f32[1,8,32], index: 2, kind: output, shape index: {}]
  %s3 = sld [smem:[#allocation0]]
  $region26: #{tpu_custom_call.1} parent=0
    _
  %s5 = ssub.s32 1, %s3
  %s6 = scalar_select 0, %s5, %s3
  $region1: #{tpu_custom_call.1} parent=0
    #allocation2 [shape = 'u8[4096]{0}', space=vmem, size = 0x1000, scoped, tag = 'input window, operand 0, single buffered']
    #allocation3 [shape = 's32[1]{0}', space=sflag, size = 0x4, scoped, tag = 'scoped memory for tpu_custom_call.1']
    #allocation4 [shape = 's32[1]{0}', space=sflag, size = 0x4, scoped, tag = 'scoped memory for tpu_custom_call.1']
    #allocation5 [shape = 'u8[53248]{0}', space=vmem, size = 0xd000, scoped, tag = 'input window, operand 1, single buffered']
    #allocation6 [shape = 's32[1]{0}', space=sflag, size = 0x4, scoped, tag = 'scoped memory for tpu_custom_call.1']
    #allocation7 [shape = 'u8[4096]{0}', space=vmem, size = 0x1000, scoped, tag = 'output window, operand 0, single buffered']
    %7 = vsyncpa [#allocation3], 0
    %8 = vsyncpa [#allocation6], 0
    %9 = vsyncpa [#allocation4], 0
    // Predicated region
    $region2: #{tpu_custom_call.1} parent=1 // pred_check
      _
    $region3: #{tpu_custom_call.1} parent=1 // pred_check_branch
      %11 = sbr.rel (0) target = $region5
    $region4: #{tpu_custom_call.1} parent=1 // pred_region
      %s13 = ssub.s32 128, 128
      %14 = vsyncadd [#allocation3], %s13
      %s16 = sshll.u32 [#allocation2], 4
      %s17 = int_to_ptr.vmem [resolvable:$true] %s16
      %19 = dma.hbm_to_vmem [thread:$0]  %s0, 128, %s17, [#allocation3]
    $region5: #{tpu_custom_call.1} parent=1 // pred_fallthru
      _
    // Predicated region
    $region6: #{tpu_custom_call.1} parent=1 // pred_check
      _
    $region7: #{tpu_custom_call.1} parent=1 // pred_check_branch
      %21 = sbr.rel (0) target = $region9
    $region8: #{tpu_custom_call.1} parent=1 // pred_region
      %s23 = ssub.s32 1664, 1664
      %24 = vsyncadd [#allocation6], %s23
      %s25 = sshll.u32 [#allocation5], 4
      %s26 = int_to_ptr.vmem [resolvable:$true] %s25
      %31 = dma.hbm_to_vmem [thread:$0]  %s1, 1664, %s26, [#allocation6], 128, 128, 8
    $region9: #{tpu_custom_call.1} parent=1 // pred_fallthru
      _
    // Predicated region
    $region10: #{tpu_custom_call.1} parent=1 // pred_check
      _
    $region11: #{tpu_custom_call.1} parent=1 // pred_check_branch
      %33 = sbr.rel (0) target = $region13
    $region12: #{tpu_custom_call.1} parent=1 // pred_region
      %34 = dma.done [#allocation3], 128
    $region13: #{tpu_custom_call.1} parent=1 // pred_fallthru
      _
    // Predicated region
    $region14: #{tpu_custom_call.1} parent=1 // pred_check
      _
    $region15: #{tpu_custom_call.1} parent=1 // pred_check_branch
      %36 = sbr.rel (0) target = $region17
    $region16: #{tpu_custom_call.1} parent=1 // pred_region
      %37 = dma.done [#allocation6], 1664
    $region17: #{tpu_custom_call.1} parent=1 // pred_fallthru
      _
    %v38 = vld [vmem:[#allocation2] sm:$0xff]
    %v39 = vld [vmem:[#allocation5 + $0x48] sm:$0xff]
    %v40 = vadd.f32 %v38, %v39
    %v41 = vld [vmem:[#allocation5 + $0x48] sm:$0xff]
    %v42 = vld [vmem:[#allocation5 + $0x50] sm:$0xff]
    %v43 = vld [vmem:[#allocation5 + $0x58] sm:$0xff]
    %v44 = vld [vmem:[#allocation5 + $0x60] sm:$0xff]
    %v45 = vld [vmem:[#allocation5] sm:$0xff]
    %v46 = vld [vmem:[#allocation5 + $0x8] sm:$0xff]
    %v47 = vld [vmem:[#allocation5 + $0x10] sm:$0xff]
    %v48 = vld [vmem:[#allocation5 + $0x18] sm:$0xff]
    %v49 = vld [vmem:[#allocation5 + $0x20] sm:$0xff]
    %v50 = vld [vmem:[#allocation5 + $0x28] sm:$0xff]
    %v51 = vld [vmem:[#allocation5 + $0x30] sm:$0xff]
    %v52 = vld [vmem:[#allocation5 + $0x38] sm:$0xff]
    %v53 = vld [vmem:[#allocation5 + $0x40] sm:$0x1]
    %v54 = vld [vmem:[#allocation5 + $0x41] sm:$0x1]
    %v55 = vld [vmem:[#allocation5 + $0x42] sm:$0x1]
    %v56 = vld [vmem:[#allocation5 + $0x43] sm:$0x1]
    %v57 = vld [vmem:[#allocation5 + $0x44] sm:$0x1]
    %v58 = vld [vmem:[#allocation5 + $0x45] sm:$0x1]
    %v59 = vld [vmem:[#allocation5 + $0x46] sm:$0x1]
    %v60 = vld [vmem:[#allocation5 + $0x47] sm:$0x1]
    %v61 = vlaneseq
    %v62 = vshrl.u32 %v61, 7
    %v63 = vsub.s32 0, %v62
    %v64 = vrot.slane %v53, %v63
    %vm65 = vcmask 261120
    %v67 = vsel %vm65, %v40, 0
    %69 = vmatprep.subr.mxu0 0.0
    %70 = vmatpush1.msra.mxu0 %v45
    %71 = vmatprep.subr.mxu0 0.0
    %72 = vmatpush1.msra.mxu0 %v46
    %73 = vmatprep.subr.mxu0 0.0
    %74 = vmatpush1.msra.mxu0 %v47
    %75 = vmatprep.subr.mxu0 0.0
    %76 = vmatpush1.msra.mxu0 %v48
    %77 = vmatprep.subr.mxu0 0.0
    %78 = vmatpush1.msra.mxu0 0.0
    %79 = vmatprep.subr.mxu0 0.0
    %80 = vmatpush1.msra.mxu0 0.0
    %81 = vmatprep.subr.mxu0 0.0
    %82 = vmatpush1.msra.mxu0 0.0
    %83 = vmatprep.subr.mxu0 0.0
    %84 = vmatpush1.msra.mxu0 0.0
    %85 = vmatprep.subr.mxu0 0.0
    %86 = vmatpush1.msra.mxu0 0.0
    %87 = vmatprep.subr.mxu0 0.0
    %88 = vmatpush1.msra.mxu0 0.0
    %89 = vmatprep.subr.mxu0 0.0
    %90 = vmatpush1.msra.mxu0 0.0
    %91 = vmatprep.subr.mxu0 0.0
    %92 = vmatpush1.msra.mxu0 0.0
    %93 = vmatprep.subr.mxu0 0.0
    %94 = vmatpush1.msra.mxu0 0.0
    %95 = vmatprep.subr.mxu0 0.0
    %96 = vmatpush1.msra.mxu0 0.0
    %97 = vmatprep.subr.mxu0 0.0
    %98 = vmatpush1.msra.mxu0 0.0
    %99 = vmatprep.subr.mxu0 0.0
    %100 = vmatpush1.msra.mxu0 0.0
    %101 = vmatprep.subr.mxu0 0.0
    %102 = vmatpush1.msra.mxu0 0.0
    %103 = vmatprep.subr.mxu0 0.0
    %104 = vmatpush1.msra.mxu0 0.0
    %105 = vmatprep.subr.mxu0 0.0
    %106 = vmatpush1.msra.mxu0 0.0
    %107 = vmatprep.subr.mxu0 0.0
    %108 = vmatpush1.msra.mxu0 0.0
    %109 = vmatprep.subr.mxu0 0.0
    %110 = vmatpush1.msra.mxu0 0.0
    %111 = vmatprep.subr.mxu0 0.0
    %112 = vmatpush1.msra.mxu0 0.0
    %113 = vmatprep.subr.mxu0 0.0
    %114 = vmatpush1.msra.mxu0 0.0
    %115 = vmatprep.subr.mxu0 0.0
    %116 = vmatpush1.msra.mxu0 0.0
    %117 = vmatprep.subr.mxu0 0.0
    %118 = vmatpush1.msra.mxu0 0.0
    %119 = vmatprep.subr.mxu0 0.0
    %120 = vmatpush1.msra.mxu0 0.0
    %121 = vmatprep.subr.mxu0 0.0
    %122 = vmatpush1.msra.mxu0 0.0
    %123 = vmatprep.subr.mxu0 0.0
    %124 = vmatpush1.msra.mxu0 0.0
    %125 = vmatprep.subr.mxu0 0.0
    %126 = vmatpush1.msra.mxu0 0.0
    %127 = vmatprep.subr.mxu0 0.0
    %128 = vmatpush1.msra.mxu0 0.0
    %129 = vmatprep.subr.mxu0 0.0
    %130 = vmatpush1.msra.mxu0 0.0
    %131 = vmatprep.subr.mxu0 0.0
    %132 = vmatpush1.msra.mxu0 0.0
    %133 = vmatprep.mubr.f32.mxu0 0.0
    %134 = vmatmul.mubr.f32.gmra.mrb[0].mxu0 %v67
    %v135 = vpop.f32.mrb[0].mxu0
    %v136 = vadd.f32 %v64, %v135
    %v137 = vpop.f32.mrb[0].mxu0
    %138 = vdwg.mxu0
    %140 = vrot.lane.b32.xlu0 %v136, 120
    %v141 = vpop.permute.xlu0 %140
    %142 = vrot.lane.b32.xlu0 %v136, 112
    %v143 = vpop.permute.xlu0 %142
    %144 = vrot.lane.b32.xlu0 %v136, 104
    %v145 = vpop.permute.xlu0 %144
    %146 = vrot.lane.b32.xlu0 %v136, 96
    %v147 = vpop.permute.xlu0 %146
    %148 = vrot.lane.b32.xlu0 %v141, 96
    %v149 = vpop.permute.xlu0 %148
    %150 = vrot.lane.b32.xlu0 %v143, 96
    %v151 = vpop.permute.xlu0 %150
    %152 = vrot.lane.b32.xlu0 %v145, 96
    %v153 = vpop.permute.xlu0 %152
    %158 = vrot.lane.b32.xlu0 %v41, 96
    %v159 = vpop.permute.xlu0 %158
    %160 = vrot.lane.b32.xlu0 %v42, 96
    %v161 = vpop.permute.xlu0 %160
    %162 = vrot.lane.b32.xlu0 %v43, 96
    %v163 = vpop.permute.xlu0 %162
    %164 = vrot.lane.b32.xlu0 %v44, 96
    %v165 = vpop.permute.xlu0 %164
    %vm170 = vcmask 64512
    %v171 = vsel %vm170, %v136, 0
    %v173 = vsel %vm170, %v141, 0
    %v175 = vsel %vm170, %v143, 0
    %v177 = vsel %vm170, %v145, 0
    %v179 = vsel %vm170, %v147, 0
    %v181 = vsel %vm170, %v149, 0
    %v183 = vsel %vm170, %v151, 0
    %v185 = vsel %vm170, %v153, 0
    %187 = vmatprep.subr.mxu0 0.0
    %188 = vmatpush1.xpose.msra.mxu0 %v179
    %189 = vmatprep.subr.mxu0 0.0
    %190 = vmatpush1.xpose.msra.mxu0 %v181
    %191 = vmatprep.subr.mxu0 0.0
    %192 = vmatpush1.xpose.msra.mxu0 %v183
    %193 = vmatprep.subr.mxu0 0.0
    %194 = vmatpush1.xpose.msra.mxu0 %v185
    %195 = vmatprep.subr.mxu0 0.0
    %196 = vmatpush1.xpose.msra.mxu0 0.0
    %197 = vmatprep.subr.mxu0 0.0
    %198 = vmatpush1.xpose.msra.mxu0 0.0
    %199 = vmatprep.subr.mxu0 0.0
    %200 = vmatpush1.xpose.msra.mxu0 0.0
    %201 = vmatprep.subr.mxu0 0.0
    %202 = vmatpush1.xpose.msra.mxu0 0.0
    %203 = vmatprep.subr.mxu0 0.0
    %204 = vmatpush1.xpose.msra.mxu0 0.0
    %205 = vmatprep.subr.mxu0 0.0
    %206 = vmatpush1.xpose.msra.mxu0 0.0
    %207 = vmatprep.subr.mxu0 0.0
    %208 = vmatpush1.xpose.msra.mxu0 0.0
    %209 = vmatprep.subr.mxu0 0.0
    %210 = vmatpush1.xpose.msra.mxu0 0.0
    %211 = vmatprep.subr.mxu0 0.0
    %212 = vmatpush1.xpose.msra.mxu0 0.0
    %213 = vmatprep.subr.mxu0 0.0
    %214 = vmatpush1.xpose.msra.mxu0 0.0
    %215 = vmatprep.subr.mxu0 0.0
    %216 = vmatpush1.xpose.msra.mxu0 0.0
    %217 = vmatprep.subr.mxu0 0.0
    %218 = vmatpush1.xpose.msra.mxu0 0.0
    %219 = vmatprep.subr.mxu0 0.0
    %220 = vmatpush1.xpose.msra.mxu0 0.0
    %221 = vmatprep.subr.mxu0 0.0
    %222 = vmatpush1.xpose.msra.mxu0 0.0
    %223 = vmatprep.subr.mxu0 0.0
    %224 = vmatpush1.xpose.msra.mxu0 0.0
    %225 = vmatprep.subr.mxu0 0.0
    %226 = vmatpush1.xpose.msra.mxu0 0.0
    %227 = vmatprep.subr.mxu0 0.0
    %228 = vmatpush1.xpose.msra.mxu0 0.0
    %229 = vmatprep.subr.mxu0 0.0
    %230 = vmatpush1.xpose.msra.mxu0 0.0
    %231 = vmatprep.subr.mxu0 0.0
    %232 = vmatpush1.xpose.msra.mxu0 0.0
    %233 = vmatprep.subr.mxu0 0.0
    %234 = vmatpush1.xpose.msra.mxu0 0.0
    %235 = vmatprep.subr.mxu0 0.0
    %236 = vmatpush1.xpose.msra.mxu0 0.0
    %237 = vmatprep.subr.mxu0 0.0
    %238 = vmatpush1.xpose.msra.mxu0 0.0
    %239 = vmatprep.subr.mxu0 0.0
    %240 = vmatpush1.xpose.msra.mxu0 0.0
    %241 = vmatprep.subr.mxu0 0.0
    %242 = vmatpush1.xpose.msra.mxu0 0.0
    %243 = vmatprep.subr.mxu0 0.0
    %244 = vmatpush1.xpose.msra.mxu0 0.0
    %245 = vmatprep.subr.mxu0 0.0
    %246 = vmatpush1.xpose.msra.mxu0 0.0
    %247 = vmatprep.subr.mxu0 0.0
    %248 = vmatpush1.xpose.msra.mxu0 0.0
    %249 = vmatprep.subr.mxu0 0.0
    %250 = vmatpush1.xpose.msra.mxu0 0.0
    %251 = vmatprep.mubr.f32.mxu0 0.0
    %252 = vmatmul.mubr.f32.gmra.mrb[0].mxu0 %v171
    %v253 = vpop.f32.mrb[0].mxu0
    %v254 = vadd.f32 %v159, %v253
    %v255 = vpop.f32.mrb[0].mxu0
    %256 = vmatprep.mubr.f32.mxu0 0.0
    %257 = vmatmul.mubr.f32.gmra.mrb[0].mxu0 %v173
    %v258 = vpop.f32.mrb[0].mxu0
    %v259 = vadd.f32 %v161, %v258
    %v260 = vpop.f32.mrb[0].mxu0
    %261 = vmatprep.mubr.f32.mxu0 0.0
    %262 = vmatmul.mubr.f32.gmra.mrb[0].mxu0 %v175
    %v263 = vpop.f32.mrb[0].mxu0
    %v264 = vadd.f32 %v163, %v263
    %v265 = vpop.f32.mrb[0].mxu0
    %266 = vmatprep.mubr.f32.mxu0 0.0
    %267 = vmatmul.mubr.f32.gmra.mrb[0].mxu0 %v177
    %v268 = vpop.f32.mrb[0].mxu0
    %v269 = vadd.f32 %v165, %v268
    %v270 = vpop.f32.mrb[0].mxu0
    %271 = vdwg.mxu0
    %v272 = vsel %vm65, %v254, -inf
    %273 = vmax.xlane.f32.xlu0 %v272
    %v274 = vpop.xlane.xlu0 %273
    %v275 = vsel %vm65, %v259, -inf
    %276 = vmax.xlane.f32.xlu0 %v275
    %v277 = vpop.xlane.xlu0 %276
    %v278 = vsel %vm65, %v264, -inf
    %279 = vmax.xlane.f32.xlu0 %v278
    %v280 = vpop.xlane.xlu0 %279
    %v281 = vsel %vm65, %v269, -inf
    %282 = vmax.xlane.f32.xlu0 %v281
    %v283 = vpop.xlane.xlu0 %282
    %v284 = vsub.f32 %v254, %v274
    %v285 = vsub.f32 %v259, %v277
    %v286 = vsub.f32 %v264, %v280
    %v287 = vsub.f32 %v269, %v283
    %v288 = vmul.f32 %v284, 1.442695
    %v289 = vpow.pop %v288
    %v290 = vmul.f32 %v285, 1.442695
    %v291 = vpow.pop %v290
    %v292 = vmul.f32 %v286, 1.442695
    %v293 = vpow.pop %v292
    %v294 = vmul.f32 %v287, 1.442695
    %v295 = vpow.pop %v294
    %v296 = vsel %vm65, %v289, 0.0
    %297 = vadd.xlane.f32.xlu0 %v296
    %v298 = vpop.xlane.xlu0 %297
    %v299 = vsel %vm65, %v291, 0.0
    %300 = vadd.xlane.f32.xlu0 %v299
    %v301 = vpop.xlane.xlu0 %300
    %v302 = vsel %vm65, %v293, 0.0
    %303 = vadd.xlane.f32.xlu0 %v302
    %v304 = vpop.xlane.xlu0 %303
    %v305 = vsel %vm65, %v295, 0.0
    %306 = vadd.xlane.f32.xlu0 %v305
    %v307 = vpop.xlane.xlu0 %306
    %v308 = vrcp.pop %v298
    %v309 = vmul.f32 %v289, %v308
    %v310 = vrcp.pop %v301
    %v311 = vmul.f32 %v291, %v310
    %v312 = vrcp.pop %v304
    %v313 = vmul.f32 %v293, %v312
    %v314 = vrcp.pop %v307
    %v315 = vmul.f32 %v295, %v314
    %316 = vrot.lane.b32.xlu0 %v136, 64
    %v317 = vpop.permute.xlu0 %316
    %318 = vrot.lane.b32.xlu0 %v141, 64
    %v319 = vpop.permute.xlu0 %318
    %320 = vrot.lane.b32.xlu0 %v143, 64
    %v321 = vpop.permute.xlu0 %320
    %322 = vrot.lane.b32.xlu0 %v145, 64
    %v323 = vpop.permute.xlu0 %322
    %v329 = vsel %vm65, %v309, 0
    %v332 = vsel %vm65, %v311, 0
    %v335 = vsel %vm65, %v313, 0
    %v338 = vsel %vm65, %v315, 0
    %340 = vmatprep.subr.mxu0 0.0
    %341 = vmatpush1.msra.mxu0 %v317
    %342 = vmatprep.subr.mxu0 0.0
    %343 = vmatpush1.msra.mxu0 %v319
    %344 = vmatprep.subr.mxu0 0.0
    %345 = vmatpush1.msra.mxu0 %v321
    %346 = vmatprep.subr.mxu0 0.0
    %347 = vmatpush1.msra.mxu0 %v323
    %348 = vmatprep.subr.mxu0 0.0
    %349 = vmatpush1.msra.mxu0 0.0
    %350 = vmatprep.subr.mxu0 0.0
    %351 = vmatpush1.msra.mxu0 0.0
    %352 = vmatprep.subr.mxu0 0.0
    %353 = vmatpush1.msra.mxu0 0.0
    %354 = vmatprep.subr.mxu0 0.0
    %355 = vmatpush1.msra.mxu0 0.0
    %356 = vmatprep.subr.mxu0 0.0
    %357 = vmatpush1.msra.mxu0 0.0
    %358 = vmatprep.subr.mxu0 0.0
    %359 = vmatpush1.msra.mxu0 0.0
    %360 = vmatprep.subr.mxu0 0.0
    %361 = vmatpush1.msra.mxu0 0.0
    %362 = vmatprep.subr.mxu0 0.0
    %363 = vmatpush1.msra.mxu0 0.0
    %364 = vmatprep.subr.mxu0 0.0
    %365 = vmatpush1.msra.mxu0 0.0
    %366 = vmatprep.subr.mxu0 0.0
    %367 = vmatpush1.msra.mxu0 0.0
    %368 = vmatprep.subr.mxu0 0.0
    %369 = vmatpush1.msra.mxu0 0.0
    %370 = vmatprep.subr.mxu0 0.0
    %371 = vmatpush1.msra.mxu0 0.0
    %372 = vmatprep.subr.mxu0 0.0
    %373 = vmatpush1.msra.mxu0 0.0
    %374 = vmatprep.subr.mxu0 0.0
    %375 = vmatpush1.msra.mxu0 0.0
    %376 = vmatprep.subr.mxu0 0.0
    %377 = vmatpush1.msra.mxu0 0.0
    %378 = vmatprep.subr.mxu0 0.0
    %379 = vmatpush1.msra.mxu0 0.0
    %380 = vmatprep.subr.mxu0 0.0
    %381 = vmatpush1.msra.mxu0 0.0
    %382 = vmatprep.subr.mxu0 0.0
    %383 = vmatpush1.msra.mxu0 0.0
    %384 = vmatprep.subr.mxu0 0.0
    %385 = vmatpush1.msra.mxu0 0.0
    %386 = vmatprep.subr.mxu0 0.0
    %387 = vmatpush1.msra.mxu0 0.0
    %388 = vmatprep.subr.mxu0 0.0
    %389 = vmatpush1.msra.mxu0 0.0
    %390 = vmatprep.subr.mxu0 0.0
    %391 = vmatpush1.msra.mxu0 0.0
    %392 = vmatprep.subr.mxu0 0.0
    %393 = vmatpush1.msra.mxu0 0.0
    %394 = vmatprep.subr.mxu0 0.0
    %395 = vmatpush1.msra.mxu0 0.0
    %396 = vmatprep.subr.mxu0 0.0
    %397 = vmatpush1.msra.mxu0 0.0
    %398 = vmatprep.subr.mxu0 0.0
    %399 = vmatpush1.msra.mxu0 0.0
    %400 = vmatprep.subr.mxu0 0.0
    %401 = vmatpush1.msra.mxu0 0.0
    %402 = vmatprep.subr.mxu0 0.0
    %403 = vmatpush1.msra.mxu0 0.0
    %404 = vmatprep.mubr.f32.mxu0 0.0
    %405 = vmatmul.mubr.f32.gmra.mrb[0].mxu0 %v329
    %v406 = vpop.f32.mrb[0].mxu0
    %v407 = vadd.f32 0.0, %v406
    %v408 = vpop.f32.mrb[0].mxu0
    %409 = vmatprep.mubr.f32.mxu0 0.0
    %410 = vmatmul.mubr.f32.gmra.mrb[0].mxu0 %v332
    %v411 = vpop.f32.mrb[0].mxu0
    %v412 = vadd.f32 0.0, %v411
    %v413 = vpop.f32.mrb[0].mxu0
    %414 = vmatprep.mubr.f32.mxu0 0.0
    %415 = vmatmul.mubr.f32.gmra.mrb[0].mxu0 %v335
    %v416 = vpop.f32.mrb[0].mxu0
    %v417 = vadd.f32 0.0, %v416
    %v418 = vpop.f32.mrb[0].mxu0
    %419 = vmatprep.mubr.f32.mxu0 0.0
    %420 = vmatmul.mubr.f32.gmra.mrb[0].mxu0 %v338
    %v421 = vpop.f32.mrb[0].mxu0
    %v422 = vadd.f32 0.0, %v421
    %v423 = vpop.f32.mrb[0].mxu0
    %424 = vdwg.mxu0
    %426 = vrot.lane.b32.xlu0 %v412, 8
    %v427 = vpop.permute.xlu0 %426
    %430 = vrot.lane.b32.xlu0 %v417, 16
    %v431 = vpop.permute.xlu0 %430
    %434 = vrot.lane.b32.xlu0 %v422, 24
    %v435 = vpop.permute.xlu0 %434
    %v437 = vsel %vm170, %v407, %v427
    %vm438 = vcmask 130048
    %v439 = vsel %vm438, %v437, %v431
    %vm440 = vcmask 195584
    %v441 = vsel %vm440, %v439, %v435
    %v442 = vlaneseq
    %v443 = vshrl.u32 %v442, 7
    %v444 = vsub.s32 0, %v443
    %v445 = vrot.slane %v54, %v444
    %450 = vrot.lane.b32.xlu0 %v45, 32
    %v451 = vpop.permute.xlu0 %450
    %452 = vrot.lane.b32.xlu0 %v46, 32
    %v453 = vpop.permute.xlu0 %452
    %454 = vrot.lane.b32.xlu0 %v47, 32
    %v455 = vpop.permute.xlu0 %454
    %456 = vrot.lane.b32.xlu0 %v48, 32
    %v457 = vpop.permute.xlu0 %456
    %v463 = vsel %vm65, %v441, 0
    %465 = vmatprep.subr.mxu0 0.0
    %466 = vmatpush1.msra.mxu0 %v451
    %467 = vmatprep.subr.mxu0 0.0
    %468 = vmatpush1.msra.mxu0 %v453
    %469 = vmatprep.subr.mxu0 0.0
    %470 = vmatpush1.msra.mxu0 %v455
    %471 = vmatprep.subr.mxu0 0.0
    %472 = vmatpush1.msra.mxu0 %v457
    %473 = vmatprep.subr.mxu0 0.0
    %474 = vmatpush1.msra.mxu0 0.0
    %475 = vmatprep.subr.mxu0 0.0
    %476 = vmatpush1.msra.mxu0 0.0
    %477 = vmatprep.subr.mxu0 0.0
    %478 = vmatpush1.msra.mxu0 0.0
    %479 = vmatprep.subr.mxu0 0.0
    %480 = vmatpush1.msra.mxu0 0.0
    %481 = vmatprep.subr.mxu0 0.0
    %482 = vmatpush1.msra.mxu0 0.0
    %483 = vmatprep.subr.mxu0 0.0
    %484 = vmatpush1.msra.mxu0 0.0
    %485 = vmatprep.subr.mxu0 0.0
    %486 = vmatpush1.msra.mxu0 0.0
    %487 = vmatprep.subr.mxu0 0.0
    %488 = vmatpush1.msra.mxu0 0.0
    %489 = vmatprep.subr.mxu0 0.0
    %490 = vmatpush1.msra.mxu0 0.0
    %491 = vmatprep.subr.mxu0 0.0
    %492 = vmatpush1.msra.mxu0 0.0
    %493 = vmatprep.subr.mxu0 0.0
    %494 = vmatpush1.msra.mxu0 0.0
    %495 = vmatprep.subr.mxu0 0.0
    %496 = vmatpush1.msra.mxu0 0.0
    %497 = vmatprep.subr.mxu0 0.0
    %498 = vmatpush1.msra.mxu0 0.0
    %499 = vmatprep.subr.mxu0 0.0
    %500 = vmatpush1.msra.mxu0 0.0
    %501 = vmatprep.subr.mxu0 0.0
    %502 = vmatpush1.msra.mxu0 0.0
    %503 = vmatprep.subr.mxu0 0.0
    %504 = vmatpush1.msra.mxu0 0.0
    %505 = vmatprep.subr.mxu0 0.0
    %506 = vmatpush1.msra.mxu0 0.0
    %507 = vmatprep.subr.mxu0 0.0
    %508 = vmatpush1.msra.mxu0 0.0
    %509 = vmatprep.subr.mxu0 0.0
    %510 = vmatpush1.msra.mxu0 0.0
    %511 = vmatprep.subr.mxu0 0.0
    %512 = vmatpush1.msra.mxu0 0.0
    %513 = vmatprep.subr.mxu0 0.0
    %514 = vmatpush1.msra.mxu0 0.0
    %515 = vmatprep.subr.mxu0 0.0
    %516 = vmatpush1.msra.mxu0 0.0
    %517 = vmatprep.subr.mxu0 0.0
    %518 = vmatpush1.msra.mxu0 0.0
    %519 = vmatprep.subr.mxu0 0.0
    %520 = vmatpush1.msra.mxu0 0.0
    %521 = vmatprep.subr.mxu0 0.0
    %522 = vmatpush1.msra.mxu0 0.0
    %523 = vmatprep.subr.mxu0 0.0
    %524 = vmatpush1.msra.mxu0 0.0
    %525 = vmatprep.subr.mxu0 0.0
    %526 = vmatpush1.msra.mxu0 0.0
    %527 = vmatprep.subr.mxu0 0.0
    %528 = vmatpush1.msra.mxu0 0.0
    %529 = vmatprep.mubr.f32.mxu0 0.0
    %530 = vmatmul.mubr.f32.gmra.mrb[0].mxu0 %v463
    %v531 = vpop.f32.mrb[0].mxu0
    %v532 = vadd.f32 %v445, %v531
    %v533 = vpop.f32.mrb[0].mxu0
    %534 = vdwg.mxu0
    %v535 = vadd.f32 %v40, %v532
    %v536 = vsel %vm65, %v535, 0.0
    %537 = vadd.xlane.f32.xlu0 %v536
    %v538 = vpop.xlane.xlu0 %537
    %v539 = vrcp.pop 32.0
    %v540 = vmul.f32 %v538, %v539
    %v541 = vsub.f32 %v535, %v540
    %v542 = vmul.f32 %v541, %v541
    %v543 = vsel %vm65, %v542, 0.0
    %544 = vadd.xlane.f32.xlu0 %v543
    %v545 = vpop.xlane.xlu0 %544
    %v546 = vmul.f32 %v545, %v539
    %v547 = vadd.f32 %v546, 1e-05
    %v548 = vrsqrt.pop %v547
    %v549 = vmul.f32 %v541, %v548
    %v550 = vlaneseq
    %v551 = vshrl.u32 %v550, 7
    %v552 = vsub.s32 0, %v551
    %v553 = vrot.slane %v55, %v552
    %v554 = vmul.f32 %v549, %v553
    %v555 = vlaneseq
    %v556 = vshrl.u32 %v555, 7
    %v557 = vsub.s32 0, %v556
    %v558 = vrot.slane %v56, %v557
    %v559 = vadd.f32 %v554, %v558
    %v560 = vlaneseq
    %v561 = vshrl.u32 %v560, 7
    %v562 = vsub.s32 0, %v561
    %v563 = vrot.slane %v57, %v562
    %v565 = vsel %vm65, %v559, 0
    %567 = vmatprep.subr.mxu0 0.0
    %568 = vmatpush1.msra.mxu0 %v49
    %569 = vmatprep.subr.mxu0 0.0
    %570 = vmatpush1.msra.mxu0 %v50
    %571 = vmatprep.subr.mxu0 0.0
    %572 = vmatpush1.msra.mxu0 %v51
    %573 = vmatprep.subr.mxu0 0.0
    %574 = vmatpush1.msra.mxu0 %v52
    %575 = vmatprep.subr.mxu0 0.0
    %576 = vmatpush1.msra.mxu0 0.0
    %577 = vmatprep.subr.mxu0 0.0
    %578 = vmatpush1.msra.mxu0 0.0
    %579 = vmatprep.subr.mxu0 0.0
    %580 = vmatpush1.msra.mxu0 0.0
    %581 = vmatprep.subr.mxu0 0.0
    %582 = vmatpush1.msra.mxu0 0.0
    %583 = vmatprep.subr.mxu0 0.0
    %584 = vmatpush1.msra.mxu0 0.0
    %585 = vmatprep.subr.mxu0 0.0
    %586 = vmatpush1.msra.mxu0 0.0
    %587 = vmatprep.subr.mxu0 0.0
    %588 = vmatpush1.msra.mxu0 0.0
    %589 = vmatprep.subr.mxu0 0.0
    %590 = vmatpush1.msra.mxu0 0.0
    %591 = vmatprep.subr.mxu0 0.0
    %592 = vmatpush1.msra.mxu0 0.0
    %593 = vmatprep.subr.mxu0 0.0
    %594 = vmatpush1.msra.mxu0 0.0
    %595 = vmatprep.subr.mxu0 0.0
    %596 = vmatpush1.msra.mxu0 0.0
    %597 = vmatprep.subr.mxu0 0.0
    %598 = vmatpush1.msra.mxu0 0.0
    %599 = vmatprep.subr.mxu0 0.0
    %600 = vmatpush1.msra.mxu0 0.0
    %601 = vmatprep.subr.mxu0 0.0
    %602 = vmatpush1.msra.mxu0 0.0
    %603 = vmatprep.subr.mxu0 0.0
    %604 = vmatpush1.msra.mxu0 0.0
    %605 = vmatprep.subr.mxu0 0.0
    %606 = vmatpush1.msra.mxu0 0.0
    %607 = vmatprep.subr.mxu0 0.0
    %608 = vmatpush1.msra.mxu0 0.0
    %609 = vmatprep.subr.mxu0 0.0
    %610 = vmatpush1.msra.mxu0 0.0
    %611 = vmatprep.subr.mxu0 0.0
    %612 = vmatpush1.msra.mxu0 0.0
    %613 = vmatprep.subr.mxu0 0.0
    %614 = vmatpush1.msra.mxu0 0.0
    %615 = vmatprep.subr.mxu0 0.0
    %616 = vmatpush1.msra.mxu0 0.0
    %617 = vmatprep.subr.mxu0 0.0
    %618 = vmatpush1.msra.mxu0 0.0
    %619 = vmatprep.subr.mxu0 0.0
    %620 = vmatpush1.msra.mxu0 0.0
    %621 = vmatprep.subr.mxu0 0.0
    %622 = vmatpush1.msra.mxu0 0.0
    %623 = vmatprep.subr.mxu0 0.0
    %624 = vmatpush1.msra.mxu0 0.0
    %625 = vmatprep.subr.mxu0 0.0
    %626 = vmatpush1.msra.mxu0 0.0
    %627 = vmatprep.subr.mxu0 0.0
    %628 = vmatpush1.msra.mxu0 0.0
    %629 = vmatprep.subr.mxu0 0.0
    %630 = vmatpush1.msra.mxu0 0.0
    %631 = vmatprep.mubr.f32.mxu0 0.0
    %632 = vmatmul.mubr.f32.gmra.mrb[0].mxu0 %v565
    %v633 = vpop.f32.mrb[0].mxu0
    %v634 = vadd.f32 %v563, %v633
    %v635 = vpop.f32.mrb[0].mxu0
    %636 = vdwg.mxu0
    %v637 = vmul.f32 %v634, 0.5
    %v638 = vmul.f32 %v634, 0.044715
    %v639 = vmul.f32 %v638, %v634
    %v640 = vmul.f32 %v639, %v634
    %v641 = vadd.f32 %v634, %v640
    %v642 = vmul.f32 %v641, 0.7978846
    %v643 = vtanh.pop %v642
    %v644 = vadd.f32 %v643, 1.0
    %v645 = vmul.f32 %v637, %v644
    %v646 = vlaneseq
    %v647 = vshrl.u32 %v646, 7
    %v648 = vsub.s32 0, %v647
    %v649 = vrot.slane %v58, %v648
    %654 = vrot.lane.b32.xlu0 %v49, 64
    %v655 = vpop.permute.xlu0 %654
    %656 = vrot.lane.b32.xlu0 %v50, 64
    %v657 = vpop.permute.xlu0 %656
    %658 = vrot.lane.b32.xlu0 %v51, 64
    %v659 = vpop.permute.xlu0 %658
    %660 = vrot.lane.b32.xlu0 %v52, 64
    %v661 = vpop.permute.xlu0 %660
    %vm662 = vcmask 523264
    %v664 = vsel %vm662, %v645, 0
    %v666 = vsel %vm662, %v655, 0
    %v668 = vsel %vm662, %v657, 0
    %v670 = vsel %vm662, %v659, 0
    %v672 = vsel %vm662, %v661, 0
    %674 = vmatprep.subr.mxu0 0.0
    %675 = vmatpush1.xpose.msra.mxu0 %v666
    %676 = vmatprep.subr.mxu0 0.0
    %677 = vmatpush1.xpose.msra.mxu0 %v668
    %678 = vmatprep.subr.mxu0 0.0
    %679 = vmatpush1.xpose.msra.mxu0 %v670
    %680 = vmatprep.subr.mxu0 0.0
    %681 = vmatpush1.xpose.msra.mxu0 %v672
    %682 = vmatprep.subr.mxu0 0.0
    %683 = vmatpush1.xpose.msra.mxu0 0.0
    %684 = vmatprep.subr.mxu0 0.0
    %685 = vmatpush1.xpose.msra.mxu0 0.0
    %686 = vmatprep.subr.mxu0 0.0
    %687 = vmatpush1.xpose.msra.mxu0 0.0
    %688 = vmatprep.subr.mxu0 0.0
    %689 = vmatpush1.xpose.msra.mxu0 0.0
    %690 = vmatprep.subr.mxu0 0.0
    %691 = vmatpush1.xpose.msra.mxu0 0.0
    %692 = vmatprep.subr.mxu0 0.0
    %693 = vmatpush1.xpose.msra.mxu0 0.0
    %694 = vmatprep.subr.mxu0 0.0
    %695 = vmatpush1.xpose.msra.mxu0 0.0
    %696 = vmatprep.subr.mxu0 0.0
    %697 = vmatpush1.xpose.msra.mxu0 0.0
    %698 = vmatprep.subr.mxu0 0.0
    %699 = vmatpush1.xpose.msra.mxu0 0.0
    %700 = vmatprep.subr.mxu0 0.0
    %701 = vmatpush1.xpose.msra.mxu0 0.0
    %702 = vmatprep.subr.mxu0 0.0
    %703 = vmatpush1.xpose.msra.mxu0 0.0
    %704 = vmatprep.subr.mxu0 0.0
    %705 = vmatpush1.xpose.msra.mxu0 0.0
    %706 = vmatprep.subr.mxu0 0.0
    %707 = vmatpush1.xpose.msra.mxu0 0.0
    %708 = vmatprep.subr.mxu0 0.0
    %709 = vmatpush1.xpose.msra.mxu0 0.0
    %710 = vmatprep.subr.mxu0 0.0
    %711 = vmatpush1.xpose.msra.mxu0 0.0
    %712 = vmatprep.subr.mxu0 0.0
    %713 = vmatpush1.xpose.msra.mxu0 0.0
    %714 = vmatprep.subr.mxu0 0.0
    %715 = vmatpush1.xpose.msra.mxu0 0.0
    %716 = vmatprep.subr.mxu0 0.0
    %717 = vmatpush1.xpose.msra.mxu0 0.0
    %718 = vmatprep.subr.mxu0 0.0
    %719 = vmatpush1.xpose.msra.mxu0 0.0
    %720 = vmatprep.subr.mxu0 0.0
    %721 = vmatpush1.xpose.msra.mxu0 0.0
    %722 = vmatprep.subr.mxu0 0.0
    %723 = vmatpush1.xpose.msra.mxu0 0.0
    %724 = vmatprep.subr.mxu0 0.0
    %725 = vmatpush1.xpose.msra.mxu0 0.0
    %726 = vmatprep.subr.mxu0 0.0
    %727 = vmatpush1.xpose.msra.mxu0 0.0
    %728 = vmatprep.subr.mxu0 0.0
    %729 = vmatpush1.xpose.msra.mxu0 0.0
    %730 = vmatprep.subr.mxu0 0.0
    %731 = vmatpush1.xpose.msra.mxu0 0.0
    %732 = vmatprep.subr.mxu0 0.0
    %733 = vmatpush1.xpose.msra.mxu0 0.0
    %734 = vmatprep.subr.mxu0 0.0
    %735 = vmatpush1.xpose.msra.mxu0 0.0
    %736 = vmatprep.subr.mxu0 0.0
    %737 = vmatpush1.xpose.msra.mxu0 0.0
    %738 = vmatprep.mubr.f32.mxu0 0.0
    %739 = vmatmul.mubr.f32.gmra.mrb[0].mxu0 %v664
    %v740 = vpop.f32.mrb[0].mxu0
    %v741 = vadd.f32 %v649, %v740
    %v742 = vpop.f32.mrb[0].mxu0
    %743 = vdwg.mxu0
    %v744 = vadd.f32 %v559, %v741
    %v745 = vsel %vm65, %v744, 0.0
    %746 = vadd.xlane.f32.xlu0 %v745
    %v747 = vpop.xlane.xlu0 %746
    %v748 = vmul.f32 %v747, %v539
    %v749 = vsub.f32 %v744, %v748
    %v750 = vmul.f32 %v749, %v749
    %v751 = vsel %vm65, %v750, 0.0
    %752 = vadd.xlane.f32.xlu0 %v751
    %v753 = vpop.xlane.xlu0 %752
    %v754 = vmul.f32 %v753, %v539
    %v755 = vadd.f32 %v754, 1e-05
    %v756 = vrsqrt.pop %v755
    %v757 = vmul.f32 %v749, %v756
    %v758 = vlaneseq
    %v759 = vshrl.u32 %v758, 7
    %v760 = vsub.s32 0, %v759
    %v761 = vrot.slane %v59, %v760
    %v762 = vmul.f32 %v757, %v761
    %v763 = vlaneseq
    %v764 = vshrl.u32 %v763, 7
    %v765 = vsub.s32 0, %v764
    %v766 = vrot.slane %v60, %v765
    %v767 = vadd.f32 %v762, %v766
    %768 = vst.msk [vmem:[#allocation7] sm:$0xff] %vm65, %v767
    // Predicated region
    $region18: #{tpu_custom_call.1} parent=1 // pred_check
      _
    $region19: #{tpu_custom_call.1} parent=1 // pred_check_branch
      %770 = sbr.rel (0) target = $region21
    $region20: #{tpu_custom_call.1} parent=1 // pred_region
      %s772 = ssub.s32 128, 128
      %773 = vsyncadd [#allocation4], %s772
      %s775 = sshll.u32 [#allocation7], 4
      %s776 = int_to_ptr.vmem [resolvable:$true] %s775
      %778 = dma.vmem_to_hbm [thread:$0]  %s776, 128, %s2, [#allocation4]
    $region21: #{tpu_custom_call.1} parent=1 // pred_fallthru
      _
    // Predicated region
    $region22: #{tpu_custom_call.1} parent=1 // pred_check
      _
    $region23: #{tpu_custom_call.1} parent=1 // pred_check_branch
      %780 = sbr.rel (0) target = $region25
    $region24: #{tpu_custom_call.1} parent=1 // pred_region
      %781 = dma.done [#allocation4], 128
    $region25: #{tpu_custom_call.1} parent=1 // pred_fallthru
      _
    %782 = vsyncpa [#allocation3], 1
    %783 = vsyncpa [#allocation6], 1
    %784 = vsyncpa [#allocation4], 1

</llo_original>
